<compile_context>
chip_gen: v7x
topology: tpu7x:2x2x1
jax: 0.10.0
libtpu: 0.0.40
codegen_flags: <defaults>
</compile_context>

<pallas_src>
import functools

import jax
import jax.numpy as jnp
from jax import lax
from jax.experimental import pallas as pl
from jax.experimental.pallas import tpu as pltpu

LANES = 128
SUBLANES = 8
MAX_BLOCK_ROWS = 4096   # (4096, 128) f32 block = 2 MiB
NUM_CHUNKS = 2          # feeds both TensorCores on v7x; no-op cost on v5e/v6e


def _l2reg_kernel(x_ref, o_ref, *, total_rows, block_rows, inner_steps):
    c = pl.program_id(0)   # parallel chunk (megacore axis)
    i = pl.program_id(1)   # sequential reduction step

    @pl.when(i == 0)
    def _():
        o_ref[...] = jnp.zeros_like(o_ref)

    x = x_ref[...].astype(jnp.float32)
    x2 = x * x

    # Mask rows past the logical end of the slab. This covers both the
    # partial edge block and any over-provisioned (clamped) grid steps, whose
    # VMEM contents are undefined.
    row_start = (c * inner_steps + i) * block_rows
    row_ids = lax.broadcasted_iota(jnp.int32, x2.shape, 0) + row_start
    x2 = jnp.where(row_ids < total_rows, x2, 0.0)

    # VPU-only partial reduce: fold row-groups of 8 into the (8, 128)
    # accumulator resident in the output block. Cross-lane reduce is deferred.
    o_ref[...] += jnp.sum(x2.reshape(-1, SUBLANES, LANES), axis=0)


def l2_reg(inputs: jax.Array) -> jax.Array:
    """sum(inputs**2) / batch_size, reduction done inside a Pallas kernel."""
    batch_size = inputs.shape[0]

    flat = inputs.reshape(-1)          # free reshape, keeps native dtype
    n = flat.shape[0]
    rem = n % LANES
    if rem != 0:
        # TODO(synk): rare ragged case (numel % 128 != 0) pays one small pad
        # pass; the common case takes the copy-free path below.
        flat = jnp.pad(flat, (0, LANES - rem))
    x2d = flat.reshape(-1, LANES)
    total_rows = x2d.shape[0]

    # Biggest block that makes sense: up to 2 MiB (f32), rounded to sublanes.
    block_rows = min(MAX_BLOCK_ROWS,
                     ((total_rows + SUBLANES - 1) // SUBLANES) * SUBLANES)
    row_blocks = pl.cdiv(total_rows, block_rows)
    inner_steps = pl.cdiv(row_blocks, NUM_CHUNKS)
    last_block = row_blocks - 1

    kernel = functools.partial(
        _l2reg_kernel,
        total_rows=total_rows,
        block_rows=block_rows,
        inner_steps=inner_steps,
    )

    def in_map(c, i):
        # Clamp over-provisioned steps to the last real block; their
        # contribution is zeroed by the in-kernel row mask.
        return (jnp.minimum(c * inner_steps + i, last_block), 0)

    partials = pl.pallas_call(
        kernel,
        out_shape=jax.ShapeDtypeStruct((NUM_CHUNKS * SUBLANES, LANES),
                                       jnp.float32),
        grid_spec=pltpu.PrefetchScalarGridSpec(
            num_scalar_prefetch=0,
            grid=(NUM_CHUNKS, inner_steps),
            in_specs=[pl.BlockSpec((block_rows, LANES), in_map)],
            out_specs=pl.BlockSpec((SUBLANES, LANES), lambda c, i: (c, 0)),
        ),
        compiler_params=pltpu.CompilerParams(
            dimension_semantics=("parallel", "arbitrary"),
        ),
    )(x2d)

    # Tiny (2048-element) final reduce + batch-size division outside the kernel.
    return jnp.sum(partials) / batch_size


if __name__ == "__main__":
    key = jax.random.PRNGKey(0)
    x = jax.random.normal(key, (2, 4, 16, 16), dtype=jnp.float32)

    result = l2_reg(x)
    jax.block_until_ready(result)

    expected = jnp.sum(x.astype(jnp.float32) ** 2) / x.shape[0]
    assert jnp.allclose(result, expected, rtol=1e-5, atol=1e-5), (result, expected)

    print("KERNEL_OK")
</pallas_src>

<mosaic_0001>
module attributes {stable_mosaic.version = 11 : i64} {
  func.func @_l2reg_kernel(%arg0: i32, %arg1: i32, %arg2: memref<16x128xf32, #tpu.memory_space<vmem>>, %arg3: memref<8x128xf32, #tpu.memory_space<vmem>>) attributes {dimension_semantics = [#tpu.dimension_semantics<parallel>, #tpu.dimension_semantics<arbitrary>], iteration_bounds = array<i64: 2, 1>, scalar_prefetch = 0 : i64, scratch_operands = 0 : i64, tpu.core_type = #tpu.core_type<tc>, window_params = [{transform_indices = @transform_0, window_bounds = array<i64: 16, 128>}, {transform_indices = @transform_1, window_bounds = array<i64: 8, 128>}]} {
    %c0_i32 = arith.constant 0 : i32
    %0 = arith.cmpi eq, %arg1, %c0_i32 : i32
    %1 = arith.extui %0 : i1 to i32
    %c0_i32_0 = arith.constant 0 : i32
    %2 = arith.cmpi ne, %1, %c0_i32_0 : i32
    scf.if %2 {
      %cst_8 = arith.constant 0.000000e+00 : f32
      %20 = vector.broadcast %cst_8 : f32 to vector<8x128xf32>
      %c0_9 = arith.constant 0 : index
      %c0_10 = arith.constant 0 : index
      %21 = vector.load %arg3[%c0_9, %c0_10] : memref<8x128xf32, #tpu.memory_space<vmem>>, vector<8x128xf32>
      tpu.vector_store %arg3[%c0_9, %c0_10], %20 {strides = array<i32>} : memref<8x128xf32, #tpu.memory_space<vmem>>, vector<8x128xf32>,
    } else {
    }
    %c0 = arith.constant 0 : index
    %c0_1 = arith.constant 0 : index
    %3 = vector.load %arg2[%c0, %c0_1] : memref<16x128xf32, #tpu.memory_space<vmem>>, vector<16x128xf32>
    %4 = arith.mulf %3, %3 : vector<16x128xf32>
    %c1_i32 = arith.constant 1 : i32
    %5 = arith.muli %arg0, %c1_i32 : i32
    %6 = arith.addi %5, %arg1 : i32
    %c16_i32 = arith.constant 16 : i32
    %7 = arith.muli %6, %c16_i32 : i32
    %8 = tpu.iota {dimensions = array<i32: 0>} : vector<16x128xi32>
    %9 = vector.broadcast %7 : i32 to vector<16x128xi32>
    %10 = arith.addi %8, %9 : vector<16x128xi32>
    %c16_i32_2 = arith.constant 16 : i32
    %11 = vector.broadcast %c16_i32_2 : i32 to vector<16x128xi32>
    %12 = arith.cmpi slt, %10, %11 : vector<16x128xi32>
    %cst = arith.constant 0.000000e+00 : f32
    %13 = vector.broadcast %cst : f32 to vector<16x128xf32>
    %14 = arith.select %12, %4, %13 : vector<16x128xi1>, vector<16x128xf32>
    %c0_3 = arith.constant 0 : index
    %c0_4 = arith.constant 0 : index
    %15 = vector.load %arg3[%c0_3, %c0_4] : memref<8x128xf32, #tpu.memory_space<vmem>>, vector<8x128xf32>
    %16 = vector.shape_cast %14 : vector<16x128xf32> to vector<2x8x128xf32>
    %cst_5 = arith.constant dense<0.000000e+00> : vector<8x128xf32>
    %17 = vector.multi_reduction <add>, %16, %cst_5 [0] : vector<2x8x128xf32> to vector<8x128xf32>
    %18 = arith.addf %15, %17 : vector<8x128xf32>
    %c0_6 = arith.constant 0 : index
    %c0_7 = arith.constant 0 : index
    %19 = vector.load %arg3[%c0_6, %c0_7] : memref<8x128xf32, #tpu.memory_space<vmem>>, vector<8x128xf32>
    tpu.vector_store %arg3[%c0_6, %c0_7], %18 {strides = array<i32>} : memref<8x128xf32, #tpu.memory_space<vmem>>, vector<8x128xf32>,
    return
  }
  func.func @transform_0(%arg0: i32, %arg1: i32) -> (i32, i32) {
    %c1_i32 = arith.constant 1 : i32
    %0 = arith.muli %arg0, %c1_i32 : i32
    %1 = arith.addi %0, %arg1 : i32
    %c0_i32 = arith.constant 0 : i32
    %2 = arith.minsi %1, %c0_i32 : i32
    %c0_i32_0 = arith.constant 0 : i32
    %c0_i32_1 = arith.constant 0 : i32
    return %2, %c0_i32_0 : i32, i32
  }
  func.func @transform_1(%arg0: i32, %arg1: i32) -> (i32, i32) {
    %c0_i32 = arith.constant 0 : i32
    %c0_i32_0 = arith.constant 0 : i32
    return %arg0, %c0_i32 : i32, i32
  }
}

</mosaic_0001>

<llo_original>
// kernel: tpu_custom_call.1
$region0: #{tpu_custom_call.1}
  #allocation0 [shape = 'u32[]', space=smem, size = 0x4, offset = 0x4, fixed_abs, tag = 'smem constant byte address 0x4 - core index']
  #allocation1 [shape = 'u32[144,128]{1,0:T(1,128)}', space=vmem, size = 0x12000, scoped, tag = 'internal scratch']
  %s0 = inlined_call_operand.hbm [shape: f32[16,128], index: 0, kind: input, shape index: {}]
  %s1 = inlined_call_operand.hbm [shape: f32[16,128], index: 1, kind: output, shape index: {}]
  %s2 = sld [smem:[#allocation0]]
  $region45: #{tpu_custom_call.1} parent=0
    _
  %s4 = ssub.s32 1, %s2
  %s5 = scalar_select 0, %s4, %s2
  $region1: #{tpu_custom_call.1} parent=0
    #allocation2 [shape = 'u8[16384]{0}', space=vmem, size = 0x4000, scoped, tag = 'input window, operand 0']
    #allocation3 [shape = 's32[2]{0}', space=sflag, size = 0x8, scoped, tag = 'scoped memory for tpu_custom_call.1']
    #allocation4 [shape = 's32[2]{0}', space=sflag, size = 0x8, scoped, tag = 'scoped memory for tpu_custom_call.1']
    #allocation5 [shape = 'u8[8192]{0}', space=vmem, size = 0x2000, scoped, tag = 'output window, operand 0']
    %6 = vsyncpa [#allocation3], 0
    %s7 = scalar_lea.sflag [#allocation3], 1
    %8 = vsyncpa %s7, 0
    %9 = vsyncpa [#allocation4], 0
    %s10 = scalar_lea.sflag [#allocation4], 1
    %11 = vsyncpa %s10, 0
    loop: start=0, step=1, limit=4
    $region2: #{tpu_custom_call.1} parent=1 // loop_pre_header
      _
    $region3: #{tpu_custom_call.1} parent=1 // loop_header
      %s13 = sphi 0, %s17
      %p14 = scmp.ge.s32.totalorder %s13, 4
      %s20 = sphi 0, %s32
      %s21 = sphi 0, %s28
      %s22 = sphi 0, %s20
      %s23 = sphi 0, %s21
      %s24 = sphi 0, %s22
      %s25 = sphi 0, %s23
      %s41 = sphi 0, %s43
      %s44 = sphi 0, %s41
      %s45 = sphi 0, %s44
      %s61 = sphi 0, %s45
      %s67 = sphi 0, %s69
      %s70 = sphi 0, %s67
      %s71 = sphi 0, %s70
      %s87 = sphi 0, %s71
    $region4: #{tpu_custom_call.1} parent=1 // loop_header_branch
      %16 = sbr.rel (%p14) target = $region8
    $region5: #{tpu_custom_call.1} parent=1 // loop_body
      %s18 = ssub.s32 %s13, 1
      %s19 = ssub.s32 %s13, 2
      %s26 = sadd.s32 1, %s21
      %p27 = scmp.ge.s32.totalorder %s26, 1
      %s28 = scalar_select %p27, 0, %s26
      %s29 = sadd.s32 1, %s20
      %s30 = scalar_select %p27, %s29, %s20
      %p31 = scmp.ge.s32.totalorder %s30, 2
      %s32 = scalar_select %p31, 0, %s30
      %s33 = sadd.s32 %s20, %s21
      %p34 = scmp.lt.s32.totalorder %s33, 0
      %s35 = scalar_select %p34, %s33, 0
      %s36 = sadd.s32 %s32, %s28
      %p37 = scmp.lt.s32.totalorder %s36, 0
      %s38 = scalar_select %p37, %s36, 0
      %s39 = ssub.s32 %s35, %s38
      %p40 = scmp.eq.s32.totalorder %s39, 0
      %s42 = sadd.s32 %s41, 1
      %s43 = scalar_select %p40, %s41, %s42
      %p46 = pneg %p40
      %p47 = scmp.eq.s32.totalorder %s13, 1
      %p48 = por %p46, %p47
      %p49 = scmp.ne.s32.totalorder %s41, %s44
      %p50 = scmp.eq.s32.totalorder %s13, 0
      %p51 = por %p49, %p50
      %p52 = scmp.ne.s32.totalorder %s41, %s44
      %p53 = scmp.eq.s32.totalorder %s18, 1
      %p54 = por %p52, %p53
      %p55 = scmp.ne.s32.totalorder %s44, %s45
      %p56 = scmp.eq.s32.totalorder %s18, 0
      %p57 = por %p55, %p56
      %p58 = scmp.ne.s32.totalorder %s44, %s45
      %p59 = scmp.eq.s32.totalorder %s19, 1
      %p60 = por %p58, %p59
      %p62 = scmp.ne.s32.totalorder %s45, %s61
      %p63 = scmp.eq.s32.totalorder %s19, 0
      %p64 = por %p62, %p63
      %s65 = ssub.s32 %s20, %s32
      %p66 = scmp.eq.s32.totalorder %s65, 0
      %s68 = sadd.s32 %s67, 1
      %s69 = scalar_select %p66, %s67, %s68
      %p72 = pneg %p66
      %p73 = scmp.eq.s32.totalorder %s13, 1
      %p74 = por %p72, %p73
      %p75 = scmp.ne.s32.totalorder %s67, %s70
      %p76 = scmp.eq.s32.totalorder %s13, 0
      %p77 = por %p75, %p76
      %p78 = scmp.ne.s32.totalorder %s67, %s70
      %p79 = scmp.eq.s32.totalorder %s18, 1
      %p80 = por %p78, %p79
      %p81 = scmp.ne.s32.totalorder %s70, %s71
      %p82 = scmp.eq.s32.totalorder %s18, 0
      %p83 = por %p81, %p82
      %p84 = scmp.ne.s32.totalorder %s70, %s71
      %p85 = scmp.eq.s32.totalorder %s19, 1
      %p86 = por %p84, %p85
      %p88 = scmp.ne.s32.totalorder %s71, %s87
      %p89 = scmp.eq.s32.totalorder %s19, 0
      %p90 = por %p88, %p89
      %p91 = scmp.le.s32.totalorder 1, %s13
      %p92 = scmp.lt.s32.totalorder %s13, 3
      %p93 = pnand %p91, %p92
      %p94 = pneg %p93
      // Predicated region
      $region9: #{tpu_custom_call.1} parent=5 // pred_check
        _
      $region10: #{tpu_custom_call.1} parent=5 // pred_check_branch
        %96 = sbr.rel (%p93) target = $region12
      $region11: #{tpu_custom_call.1} parent=5 // pred_region
        %s97 = ssub.s32 %s13, 1
      $region12: #{tpu_custom_call.1} parent=5 // pred_fallthru
        _
      %p98 = scmp.lt.s32.totalorder %s13, 2
      // Predicated region
      $region13: #{tpu_custom_call.1} parent=5 // pred_check
        %p99 = pneg %p98
      $region14: #{tpu_custom_call.1} parent=5 // pred_check_branch
        %101 = sbr.rel (%p99) target = $region16
      $region15: #{tpu_custom_call.1} parent=5 // pred_region
        // Predicated region
        $region17: #{tpu_custom_call.1} parent=15 // pred_check
          %p102 = pneg %p51
        $region18: #{tpu_custom_call.1} parent=15 // pred_check_branch
          %104 = sbr.rel (%p102) target = $region20
        $region19: #{tpu_custom_call.1} parent=15 // pred_region
          %s105 = sand.u32 %s41, 1
          %s106 = scalar_lea.sflag [#allocation3], %s105
          %s107 = sand.u32 %s41, 1
          %s108 = smul.addr %s107, 16
          %s109 = scalar_lea.vmem [#allocation2], %s108
          %s110 = sadd.s32 %s20, %s21
          %p111 = scmp.lt.s32.totalorder %s110, 0
          %s112 = scalar_select %p111, %s110, 0
          %s113 = smul.u32 2, %s112
          %s115 = ssub.s32 256, 256
          %116 = vsyncadd %s106, %s115
          %s117 = smul.addr %s113, 128
          %s118 = scalar_lea.hbm %s0, %s117
          %s119 = sshll.u32 %s109, 4
          %s120 = int_to_ptr.vmem [resolvable:$true] %s119
          %125 = dma.hbm_to_vmem [thread:$0]  %s118, 256, %s120, %s106, 128, 128, 8
        $region20: #{tpu_custom_call.1} parent=15 // pred_fallthru
          _
      $region16: #{tpu_custom_call.1} parent=5 // pred_fallthru
        _
      %p126 = scmp.le.s32.totalorder 1, %s13
      %p127 = scmp.lt.s32.totalorder %s13, 3
      %p128 = pnand %p126, %p127
      %p129 = pneg %p128
      // Predicated region
      $region21: #{tpu_custom_call.1} parent=5 // pred_check
        _
      $region22: #{tpu_custom_call.1} parent=5 // pred_check_branch
        %131 = sbr.rel (%p128) target = $region24
      $region23: #{tpu_custom_call.1} parent=5 // pred_region
        %s132 = ssub.s32 %s13, 1
        %s133 = sand.u32 %s44, 1
        %s134 = scalar_lea.sflag [#allocation3], %s133
        %s135 = sand.u32 %s44, 1
        %s136 = smul.addr %s135, 16
        %s137 = scalar_lea.vmem [#allocation2], %s136
        // Predicated region
        $region25: #{tpu_custom_call.1} parent=23 // pred_check
          %p138 = pneg %p57
        $region26: #{tpu_custom_call.1} parent=23 // pred_check_branch
          %140 = sbr.rel (%p138) target = $region28
        $region27: #{tpu_custom_call.1} parent=23 // pred_region
          %141 = dma.done %s134, 256
        $region28: #{tpu_custom_call.1} parent=23 // pred_fallthru
          _
        %s142 = sand.u32 %s44, 1
        %s143 = scalar_lea.sflag [#allocation3], %s142
        %s144 = sand.u32 %s44, 1
        %s145 = smul.addr %s144, 16
        %s146 = scalar_lea.vmem [#allocation2], %s145
        %p147 = pneg %p57
        %p148 = pneg %p54
        %p149 = pneg %p83
        %p150 = pneg %p80
        %s151 = sand.u32 %s70, 1
        %s152 = scalar_lea.sflag [#allocation4], %s151
        %s153 = sand.u32 %s70, 1
        %s154 = smul.addr %s153, 8
        %s155 = scalar_lea.vmem [#allocation5], %s154
        %s156 = sadd.s32 %s22, %s23
        %p157 = scmp.lt.s32.totalorder %s156, 0
        %s158 = scalar_select %p157, %s156, 0
        %s159 = smul.u32 2, %s158
        %p160 = scmp.eq.s32.totalorder %s23, 0
        // Predicated region
        $region29: #{tpu_custom_call.1} parent=23 // pred_check
          %p161 = pneg %p160
        $region30: #{tpu_custom_call.1} parent=23 // pred_check_branch
          %163 = sbr.rel (%p161) target = $region32
        $region31: #{tpu_custom_call.1} parent=23 // pred_region
          %164 = vst [vmem:[%s155] sm:$0xff] 0.0
        $region32: #{tpu_custom_call.1} parent=23 // pred_fallthru
          _
        %v165 = vld [vmem:[%s137] sm:$0xff]
        %v166 = vld [vmem:[%s137 + $0x8] sm:$0xff]
        %v167 = vmul.f32 %v165, %v165
        %v168 = vmul.f32 %v166, %v166
        %s169 = sadd.s32 %s22, %s23
        %s170 = smul.u32 %s169, 16
        %v171 = vlaneseq
        %v172 = vshrl.u32 %v171, 7
        %v173 = vadd.s32 %v172, 8
        %v174 = vstv %s170
        %v175 = vadd.s32 %v172, %v174
        %v176 = vadd.s32 %v173, %v174
        %vm177 = vcmp.lt.s32.totalorder %v175, 16
        %vm178 = vcmp.lt.s32.totalorder %v176, 16
        %v179 = vsel %vm177, %v167, 0.0
        %v180 = vsel %vm178, %v168, 0.0
        %v181 = vld [vmem:[%s155] sm:$0xff]
        %v182 = vadd.f32 %v179, %v180
        %v183 = vadd.f32 %v181, %v182
        %184 = vst [vmem:[%s155] sm:$0xff] %v183
        %s185 = sand.u32 %s70, 1
        %s186 = scalar_lea.sflag [#allocation4], %s185
        %s187 = sand.u32 %s70, 1
        %s188 = smul.addr %s187, 8
        %s189 = scalar_lea.vmem [#allocation5], %s188
        // Predicated region
        $region33: #{tpu_custom_call.1} parent=23 // pred_check
          %p190 = pneg %p80
        $region34: #{tpu_custom_call.1} parent=23 // pred_check_branch
          %192 = sbr.rel (%p190) target = $region36
        $region35: #{tpu_custom_call.1} parent=23 // pred_region
          %s194 = ssub.s32 128, 128
          %195 = vsyncadd %s186, %s194
          %s196 = smul.addr %s22, 128
          %s197 = scalar_lea.hbm %s1, %s196
          %s199 = sshll.u32 %s189, 4
          %s200 = int_to_ptr.vmem [resolvable:$true] %s199
          %202 = dma.vmem_to_hbm [thread:$0]  %s200, 128, %s197, %s186
        $region36: #{tpu_custom_call.1} parent=23 // pred_fallthru
          _
      $region24: #{tpu_custom_call.1} parent=5 // pred_fallthru
        _
      %p203 = scmp.le.s32.totalorder 2, %s13
      // Predicated region
      $region37: #{tpu_custom_call.1} parent=5 // pred_check
        %p204 = pneg %p203
      $region38: #{tpu_custom_call.1} parent=5 // pred_check_branch
        %206 = sbr.rel (%p204) target = $region40
      $region39: #{tpu_custom_call.1} parent=5 // pred_region
        %s207 = ssub.s32 %s13, 2
        // Predicated region
        $region41: #{tpu_custom_call.1} parent=39 // pred_check
          %p208 = pneg %p86
        $region42: #{tpu_custom_call.1} parent=39 // pred_check_branch
          %210 = sbr.rel (%p208) target = $region44
        $region43: #{tpu_custom_call.1} parent=39 // pred_region
          %s211 = sand.u32 %s71, 1
          %s212 = scalar_lea.sflag [#allocation4], %s211
          %s213 = sand.u32 %s71, 1
          %s214 = smul.addr %s213, 8
          %s215 = scalar_lea.vmem [#allocation5], %s214
          %216 = dma.done %s212, 128
        $region44: #{tpu_custom_call.1} parent=39 // pred_fallthru
          _
      $region40: #{tpu_custom_call.1} parent=5 // pred_fallthru
        _
    $region6: #{tpu_custom_call.1} parent=1 // loop_footer
      %s17 = sadd.s32 1, %s13
    $region7: #{tpu_custom_call.1} parent=1 // loop_footer_branch
      %12 = sbr.rel target = $region3
    $region8: #{tpu_custom_call.1} parent=1 // loop_exit
      _
    %217 = vsyncpa [#allocation3], 1
    %s218 = scalar_lea.sflag [#allocation3], 1
    %219 = vsyncpa %s218, 1
    %220 = vsyncpa [#allocation4], 1
    %s221 = scalar_lea.sflag [#allocation4], 1
    %222 = vsyncpa %s221, 1

</llo_original>
